<compile_context>
chip_gen: v6e
topology: v6e:2x2x1
jax: 0.10.0
libtpu: 0.0.40
codegen_flags: <defaults>
</compile_context>

<pallas_src>
import functools

import numpy as np
import jax
import jax.numpy as jnp
from jax import lax
from jax.experimental import pallas as pl
from jax.experimental.pallas import tpu as pltpu


def _sharpen_conv_kernel(k_ref, scale_ref, shift_ref, x_ref, o_ref, *, C1, C2, TH, H, W):
    # k_ref:     (9,)  f32 SMEM — the single shared 3x3 stencil (row-major)
    # scale_ref: (C2,) f32 SMEM — folded BN scale  (gamma / sqrt(var + eps))
    # shift_ref: (C2,) f32 SMEM — folded BN shift  (beta - mean * scale)
    # x_ref:     (1, C1, H, W) VMEM — whole (unpadded) image of one batch element
    # o_ref:     (1, C2, TH, W) VMEM — NCHW output row tile
    i = pl.program_id(1)
    row0 = i * TH
    if TH % 8 == 0:
        row0 = pl.multiple_of(row0, 8)

    # ---- channel-summed center window, rows [row0, row0+TH)  (always in bounds) ----
    c = x_ref[0, 0, pl.ds(row0, TH), :].astype(jnp.float32)
    for c1 in range(1, C1):
        c = c + x_ref[0, c1, pl.ds(row0, TH), :].astype(jnp.float32)

    # ---- single halo rows above / below the tile (zero outside the image) ----
    ia = jnp.maximum(row0 - 1, 0)            # clamped so the loads stay in bounds
    ib = jnp.minimum(row0 + TH, H - 1)
    ra = x_ref[0, 0, pl.ds(ia, 1), :].astype(jnp.float32)
    rb = x_ref[0, 0, pl.ds(ib, 1), :].astype(jnp.float32)
    for c1 in range(1, C1):
        ra = ra + x_ref[0, c1, pl.ds(ia, 1), :].astype(jnp.float32)
        rb = rb + x_ref[0, c1, pl.ds(ib, 1), :].astype(jnp.float32)
    ra = jnp.where(row0 > 0, ra, 0.0)        # top image border -> zero pad
    rb = jnp.where(row0 + TH < H, rb, 0.0)   # bottom image border -> zero pad

    ri = lax.broadcasted_iota(jnp.int32, (TH, 1), 0)   # row index within the tile
    ci = lax.broadcasted_iota(jnp.int32, (1, W), 1)    # column index

    # Row-shifted channel sums (XLU rolls; boundary rows patched from ra / rb).
    #   up[y] = Xsum[row0+y-1]  (0 above the image),  dn[y] = Xsum[row0+y+1]
    up = jnp.where(ri == 0, ra, pltpu.roll(c, shift=1, axis=0))
    dn = jnp.where(ri == TH - 1, rb, pltpu.roll(c, shift=TH - 1, axis=0))

    k = [k_ref[t] for t in range(9)]         # row-major 3x3 stencil scalars (SMEM)

    # Combine the three rows for each column tap first:  M_dx = sum_dy k[dy,dx] * R_dy
    m0 = k[0] * up + k[3] * c + k[6] * dn
    m1 = k[1] * up + k[4] * c + k[7] * dn
    m2 = k[2] * up + k[5] * c + k[8] * dn

    # Column taps via lane rolls; image left/right borders -> zero pad.
    #   S[y,x] = M0[y,x-1] + M1[y,x] + M2[y,x+1]
    left = jnp.where(ci == 0, 0.0, pltpu.roll(m0, shift=1, axis=1))
    right = jnp.where(ci == W - 1, 0.0, pltpu.roll(m2, shift=W - 1, axis=1))
    s = m1 + left + right                    # shared conv response (same for every c2)

    # Per-output-channel affine (folded eval-mode BN) + Hardswish; one live temp.
    for c2 in range(C2):
        y = scale_ref[c2] * s + shift_ref[c2]
        y = y * jnp.clip(y + 3.0, 0.0, 6.0) * (1.0 / 6.0)
        o_ref[0, c2] = y.astype(o_ref.dtype)


def _choose_row_tile(H, W):
    """Largest multiple-of-8 divisor of H such that ~8 live (TH, W) f32 temporaries
    (lane-padded to 128) stay within ~48 vregs; falls back to the full height."""
    lane_regs = max(1, -(-W // 128))              # vregs per 8-row sublane group
    cap = max(8, (48 // lane_regs) // 8 * 8)      # rows s.t. 8 temps * vregs <= ~48
    th = (min(cap, H) // 8) * 8
    while th >= 8:
        if H % th == 0:
            return th
        th -= 8
    return H                                      # no suitable divisor: single tile


def _compiler_kwargs(x_dtype, C1, C2, H, W, TH):
    itemsize = jnp.dtype(x_dtype).itemsize
    # resident image + output row tiles are double-buffered by the pipeline
    need = 2 * C1 * H * W * itemsize + 2 * C2 * TH * W * itemsize + (2 << 20)
    kwargs = dict(dimension_semantics=("parallel", "parallel"))
    if need > 16 * 1024 * 1024:                   # smallest per-gen scoped default (v5e)
        try:
            phys = int(pltpu.get_tpu_info().vmem_capacity_bytes)
        except Exception:
            phys = 64 * 1024 * 1024               # conservative (v7x)
        cap = max(16 * 1024 * 1024, phys - 12 * 1024 * 1024)   # leave compiler headroom
        kwargs["vmem_limit_bytes"] = int(min(need, cap))
    return kwargs


def sharpen_conv_forward(x, w_conv, bn_gamma, bn_beta, bn_mean, bn_var, eps=1e-5):
    """SharpenConv.forward with eval-mode BN: Hardswish(BN(Conv3x3_pad1(x))).

    SharpenConv replicates ONE fixed 3x3 sharpen kernel across every (c2, c1) pair,
    so conv(x)[:, c2] == stencil (x) sum_c1 x[:, c1]; the kernel exploits that.  The
    replication is verified whenever the weights are concrete (skipped under tracing,
    where SharpenConv's frozen constant weights guarantee it by construction).
    """
    N, C1, H, W = x.shape
    C2 = w_conv.shape[0]

    try:
        w_np = np.asarray(w_conv)
    except Exception:                              # traced under jit
        w_np = None
    if w_np is not None and not np.allclose(
            w_np, np.broadcast_to(w_np[:1, :1], w_np.shape)):
        raise ValueError("sharpen_conv_forward: conv weights are not a single replicated "
                         "3x3 stencil; this fused kernel only supports SharpenConv.")

    stencil = w_conv.astype(jnp.float32)[0, 0].reshape(-1)                   # (9,)
    scale = (bn_gamma / jnp.sqrt(bn_var + eps)).astype(jnp.float32)          # (C2,)
    shift = (bn_beta - bn_mean * scale).astype(jnp.float32)                  # (C2,)

    TH = _choose_row_tile(H, W)
    n_row_tiles = H // TH

    kernel = functools.partial(_sharpen_conv_kernel, C1=C1, C2=C2, TH=TH, H=H, W=W)

    return pl.pallas_call(
        kernel,
        out_shape=jax.ShapeDtypeStruct((N, C2, H, W), x.dtype),
        grid_spec=pltpu.PrefetchScalarGridSpec(
            num_scalar_prefetch=0,
            grid=(N, n_row_tiles),
            in_specs=[
                pl.BlockSpec(memory_space=pltpu.MemorySpace.SMEM),   # stencil (9,)
                pl.BlockSpec(memory_space=pltpu.MemorySpace.SMEM),   # BN scale (C2,)
                pl.BlockSpec(memory_space=pltpu.MemorySpace.SMEM),   # BN shift (C2,)
                # whole image of one batch element stays resident across its row tiles
                pl.BlockSpec((1, C1, H, W), lambda n, i: (n, 0, 0, 0)),
            ],
            out_specs=pl.BlockSpec((1, C2, TH, W), lambda n, i: (n, 0, i, 0)),
        ),
        compiler_params=pltpu.CompilerParams(**_compiler_kwargs(x.dtype, C1, C2, H, W, TH)),
    )(stencil, scale, shift, x)


def _reference(x, w_conv, bn_gamma, bn_beta, bn_mean, bn_var, eps=1e-5):
    # pure-JAX reference for sanity checking
    y = lax.conv_general_dilated(
        x.astype(jnp.float32), w_conv.astype(jnp.float32),
        window_strides=(1, 1), padding=((1, 1), (1, 1)),
        dimension_numbers=("NCHW", "OIHW", "NCHW"))
    scale = bn_gamma / jnp.sqrt(bn_var + eps)
    y = y * scale[None, :, None, None] + (bn_beta - bn_mean * scale)[None, :, None, None]
    return y * jnp.clip(y + 3.0, 0.0, 6.0) / 6.0


if __name__ == "__main__":
    # SharpenConv(c1=4, c2=8, k=3, s=1)
    c1, c2 = 4, 8
    N, H, W = 2, 16, 16

    key = jax.random.PRNGKey(0)
    kx, kg, kb, km, kv = jax.random.split(key, 5)

    x = jax.random.normal(kx, (N, c1, H, W), dtype=jnp.float32)

    # fixed sharpen kernel replicated over every (c2, c1) pair, as in SharpenConv.__init__
    sharpen = jnp.array([[-1., -1., -1.], [-1., 8., -1.], [-1., -1., -1.]], jnp.float32)
    w_conv = jnp.broadcast_to(sharpen, (c2, c1, 3, 3))

    # BatchNorm2d(c2) parameters / running stats (eval-mode semantics), non-trivial values
    bn_gamma = 1.0 + 0.1 * jax.random.normal(kg, (c2,), jnp.float32)
    bn_beta = 0.1 * jax.random.normal(kb, (c2,), jnp.float32)
    bn_mean = 0.5 * jax.random.normal(km, (c2,), jnp.float32)
    bn_var = 1.0 + 0.2 * jax.random.uniform(kv, (c2,), jnp.float32)

    fwd = jax.jit(sharpen_conv_forward)
    out = jax.block_until_ready(fwd(x, w_conv, bn_gamma, bn_beta, bn_mean, bn_var))

    ref = _reference(x, w_conv, bn_gamma, bn_beta, bn_mean, bn_var)
    assert out.shape == (N, c2, H, W), out.shape
    assert jnp.allclose(out, ref, atol=1e-3, rtol=1e-3), float(jnp.max(jnp.abs(out - ref)))

    print("KERNEL_OK")
</pallas_src>

<mosaic_0001>
module attributes {stable_mosaic.version = 11 : i64} {
  func.func @_sharpen_conv_kernel(%arg0: i32, %arg1: i32, %arg2: memref<9xf32, #tpu.memory_space<smem>>, %arg3: memref<8xf32, #tpu.memory_space<smem>>, %arg4: memref<8xf32, #tpu.memory_space<smem>>, %arg5: memref<1x4x16x16xf32, #tpu.memory_space<vmem>>, %arg6: memref<1x8x16x16xf32, #tpu.memory_space<vmem>>) attributes {dimension_semantics = [#tpu.dimension_semantics<parallel>, #tpu.dimension_semantics<parallel>], iteration_bounds = array<i64: 2, 1>, scalar_prefetch = 0 : i64, scratch_operands = 0 : i64, tpu.core_type = #tpu.core_type<tc>, window_params = [{transform_indices = @transform_0, window_bounds = array<i64: 9>}, {transform_indices = @transform_1, window_bounds = array<i64: 8>}, {transform_indices = @transform_2, window_bounds = array<i64: 8>}, {transform_indices = @transform_3, window_bounds = array<i64: 1, 4, 16, 16>}, {transform_indices = @transform_4, window_bounds = array<i64: 1, 8, 16, 16>}]} {
    %c16_i32 = arith.constant 16 : i32
    %0 = arith.muli %arg1, %c16_i32 : i32
    %1 = tpu.assume_multiple %0, 8 : i32
    %c0 = arith.constant 0 : index
    %c0_0 = arith.constant 0 : index
    %2 = arith.index_cast %1 : i32 to index
    %c0_1 = arith.constant 0 : index
    %3 = vector.load %arg5[%c0, %c0_0, %2, %c0_1] : memref<1x4x16x16xf32, #tpu.memory_space<vmem>>, vector<1x1x16x16xf32>
    %4 = vector.shape_cast %3 : vector<1x1x16x16xf32> to vector<16x16xf32>
    %c0_2 = arith.constant 0 : index
    %c1 = arith.constant 1 : index
    %5 = arith.index_cast %1 : i32 to index
    %c0_3 = arith.constant 0 : index
    %6 = vector.load %arg5[%c0_2, %c1, %5, %c0_3] : memref<1x4x16x16xf32, #tpu.memory_space<vmem>>, vector<1x1x16x16xf32>
    %7 = vector.shape_cast %6 : vector<1x1x16x16xf32> to vector<16x16xf32>
    %8 = arith.addf %4, %7 : vector<16x16xf32>
    %c0_4 = arith.constant 0 : index
    %c2 = arith.constant 2 : index
    %9 = arith.index_cast %1 : i32 to index
    %c0_5 = arith.constant 0 : index
    %10 = vector.load %arg5[%c0_4, %c2, %9, %c0_5] : memref<1x4x16x16xf32, #tpu.memory_space<vmem>>, vector<1x1x16x16xf32>
    %11 = vector.shape_cast %10 : vector<1x1x16x16xf32> to vector<16x16xf32>
    %12 = arith.addf %8, %11 : vector<16x16xf32>
    %c0_6 = arith.constant 0 : index
    %c3 = arith.constant 3 : index
    %13 = arith.index_cast %1 : i32 to index
    %c0_7 = arith.constant 0 : index
    %14 = vector.load %arg5[%c0_6, %c3, %13, %c0_7] : memref<1x4x16x16xf32, #tpu.memory_space<vmem>>, vector<1x1x16x16xf32>
    %15 = vector.shape_cast %14 : vector<1x1x16x16xf32> to vector<16x16xf32>
    %16 = arith.addf %12, %15 : vector<16x16xf32>
    %c1_i32 = arith.constant 1 : i32
    %17 = arith.subi %1, %c1_i32 : i32
    %c0_i32 = arith.constant 0 : i32
    %18 = arith.maxsi %17, %c0_i32 : i32
    %c16_i32_8 = arith.constant 16 : i32
    %19 = arith.addi %1, %c16_i32_8 : i32
    %c15_i32 = arith.constant 15 : i32
    %20 = arith.minsi %19, %c15_i32 : i32
    %c0_9 = arith.constant 0 : index
    %c0_10 = arith.constant 0 : index
    %21 = arith.index_cast %18 : i32 to index
    %c0_11 = arith.constant 0 : index
    %22 = vector.load %arg5[%c0_9, %c0_10, %21, %c0_11] : memref<1x4x16x16xf32, #tpu.memory_space<vmem>>, vector<1x1x1x16xf32>
    %23 = vector.shape_cast %22 : vector<1x1x1x16xf32> to vector<1x16xf32>
    %c0_12 = arith.constant 0 : index
    %c0_13 = arith.constant 0 : index
    %24 = arith.index_cast %20 : i32 to index
    %c0_14 = arith.constant 0 : index
    %25 = vector.load %arg5[%c0_12, %c0_13, %24, %c0_14] : memref<1x4x16x16xf32, #tpu.memory_space<vmem>>, vector<1x1x1x16xf32>
    %26 = vector.shape_cast %25 : vector<1x1x1x16xf32> to vector<1x16xf32>
    %c0_15 = arith.constant 0 : index
    %c1_16 = arith.constant 1 : index
    %27 = arith.index_cast %18 : i32 to index
    %c0_17 = arith.constant 0 : index
    %28 = vector.load %arg5[%c0_15, %c1_16, %27, %c0_17] : memref<1x4x16x16xf32, #tpu.memory_space<vmem>>, vector<1x1x1x16xf32>
    %29 = vector.shape_cast %28 : vector<1x1x1x16xf32> to vector<1x16xf32>
    %30 = arith.addf %23, %29 : vector<1x16xf32>
    %c0_18 = arith.constant 0 : index
    %c1_19 = arith.constant 1 : index
    %31 = arith.index_cast %20 : i32 to index
    %c0_20 = arith.constant 0 : index
    %32 = vector.load %arg5[%c0_18, %c1_19, %31, %c0_20] : memref<1x4x16x16xf32, #tpu.memory_space<vmem>>, vector<1x1x1x16xf32>
    %33 = vector.shape_cast %32 : vector<1x1x1x16xf32> to vector<1x16xf32>
    %34 = arith.addf %26, %33 : vector<1x16xf32>
    %c0_21 = arith.constant 0 : index
    %c2_22 = arith.constant 2 : index
    %35 = arith.index_cast %18 : i32 to index
    %c0_23 = arith.constant 0 : index
    %36 = vector.load %arg5[%c0_21, %c2_22, %35, %c0_23] : memref<1x4x16x16xf32, #tpu.memory_space<vmem>>, vector<1x1x1x16xf32>
    %37 = vector.shape_cast %36 : vector<1x1x1x16xf32> to vector<1x16xf32>
    %38 = arith.addf %30, %37 : vector<1x16xf32>
    %c0_24 = arith.constant 0 : index
    %c2_25 = arith.constant 2 : index
    %39 = arith.index_cast %20 : i32 to index
    %c0_26 = arith.constant 0 : index
    %40 = vector.load %arg5[%c0_24, %c2_25, %39, %c0_26] : memref<1x4x16x16xf32, #tpu.memory_space<vmem>>, vector<1x1x1x16xf32>
    %41 = vector.shape_cast %40 : vector<1x1x1x16xf32> to vector<1x16xf32>
    %42 = arith.addf %34, %41 : vector<1x16xf32>
    %c0_27 = arith.constant 0 : index
    %c3_28 = arith.constant 3 : index
    %43 = arith.index_cast %18 : i32 to index
    %c0_29 = arith.constant 0 : index
    %44 = vector.load %arg5[%c0_27, %c3_28, %43, %c0_29] : memref<1x4x16x16xf32, #tpu.memory_space<vmem>>, vector<1x1x1x16xf32>
    %45 = vector.shape_cast %44 : vector<1x1x1x16xf32> to vector<1x16xf32>
    %46 = arith.addf %38, %45 : vector<1x16xf32>
    %c0_30 = arith.constant 0 : index
    %c3_31 = arith.constant 3 : index
    %47 = arith.index_cast %20 : i32 to index
    %c0_32 = arith.constant 0 : index
    %48 = vector.load %arg5[%c0_30, %c3_31, %47, %c0_32] : memref<1x4x16x16xf32, #tpu.memory_space<vmem>>, vector<1x1x1x16xf32>
    %49 = vector.shape_cast %48 : vector<1x1x1x16xf32> to vector<1x16xf32>
    %50 = arith.addf %42, %49 : vector<1x16xf32>
    %c0_i32_33 = arith.constant 0 : i32
    %51 = arith.cmpi sgt, %1, %c0_i32_33 : i32
    %cst = arith.constant 0.000000e+00 : f32
    %52 = vector.broadcast %cst : f32 to vector<1x16xf32>
    %53 = arith.select %51, %46, %52 : vector<1x16xf32>
    %c16_i32_34 = arith.constant 16 : i32
    %54 = arith.addi %1, %c16_i32_34 : i32
    %c16_i32_35 = arith.constant 16 : i32
    %55 = arith.cmpi slt, %54, %c16_i32_35 : i32
    %cst_36 = arith.constant 0.000000e+00 : f32
    %56 = vector.broadcast %cst_36 : f32 to vector<1x16xf32>
    %57 = arith.select %55, %50, %56 : vector<1x16xf32>
    %58 = tpu.iota {dimensions = array<i32: 0>} : vector<16x1xi32>
    %59 = tpu.iota {dimensions = array<i32: 1>} : vector<1x16xi32>
    %c0_i32_37 = arith.constant 0 : i32
    %60 = vector.broadcast %c0_i32_37 : i32 to vector<16x1xi32>
    %61 = arith.cmpi eq, %58, %60 : vector<16x1xi32>
    %c1_i32_38 = arith.constant 1 : i32
    %62 = tpu.dynamic_rotate %16 by %c1_i32_38 dim 0 : vector<16x16xf32>, i32 -> vector<16x16xf32>
    %63 = vector.shape_cast %61 : vector<16x1xi1> to vector<16x1xi1>
    %64 = vector.broadcast %63 : vector<16x1xi1> to vector<16x16xi1>
    %65 = vector.shape_cast %53 : vector<1x16xf32> to vector<1x16xf32>
    %66 = vector.broadcast %65 : vector<1x16xf32> to vector<16x16xf32>
    %67 = arith.select %64, %66, %62 : vector<16x16xi1>, vector<16x16xf32>
    %c15_i32_39 = arith.constant 15 : i32
    %68 = vector.broadcast %c15_i32_39 : i32 to vector<16x1xi32>
    %69 = arith.cmpi eq, %58, %68 : vector<16x1xi32>
    %c15_i32_40 = arith.constant 15 : i32
    %70 = tpu.dynamic_rotate %16 by %c15_i32_40 dim 0 : vector<16x16xf32>, i32 -> vector<16x16xf32>
    %71 = vector.shape_cast %69 : vector<16x1xi1> to vector<16x1xi1>
    %72 = vector.broadcast %71 : vector<16x1xi1> to vector<16x16xi1>
    %73 = vector.shape_cast %57 : vector<1x16xf32> to vector<1x16xf32>
    %74 = vector.broadcast %73 : vector<1x16xf32> to vector<16x16xf32>
    %75 = arith.select %72, %74, %70 : vector<16x16xi1>, vector<16x16xf32>
    %c0_41 = arith.constant 0 : index
    %76 = memref.load %arg2[%c0_41] : memref<9xf32, #tpu.memory_space<smem>>
    %c1_42 = arith.constant 1 : index
    %77 = memref.load %arg2[%c1_42] : memref<9xf32, #tpu.memory_space<smem>>
    %c2_43 = arith.constant 2 : index
    %78 = memref.load %arg2[%c2_43] : memref<9xf32, #tpu.memory_space<smem>>
    %c3_44 = arith.constant 3 : index
    %79 = memref.load %arg2[%c3_44] : memref<9xf32, #tpu.memory_space<smem>>
    %c4 = arith.constant 4 : index
    %80 = memref.load %arg2[%c4] : memref<9xf32, #tpu.memory_space<smem>>
    %c5 = arith.constant 5 : index
    %81 = memref.load %arg2[%c5] : memref<9xf32, #tpu.memory_space<smem>>
    %c6 = arith.constant 6 : index
    %82 = memref.load %arg2[%c6] : memref<9xf32, #tpu.memory_space<smem>>
    %c7 = arith.constant 7 : index
    %83 = memref.load %arg2[%c7] : memref<9xf32, #tpu.memory_space<smem>>
    %c8 = arith.constant 8 : index
    %84 = memref.load %arg2[%c8] : memref<9xf32, #tpu.memory_space<smem>>
    %85 = vector.broadcast %76 : f32 to vector<16x16xf32>
    %86 = arith.mulf %85, %67 : vector<16x16xf32>
    %87 = vector.broadcast %79 : f32 to vector<16x16xf32>
    %88 = arith.mulf %87, %16 : vector<16x16xf32>
    %89 = arith.addf %86, %88 : vector<16x16xf32>
    %90 = vector.broadcast %82 : f32 to vector<16x16xf32>
    %91 = arith.mulf %90, %75 : vector<16x16xf32>
    %92 = arith.addf %89, %91 : vector<16x16xf32>
    %93 = vector.broadcast %77 : f32 to vector<16x16xf32>
    %94 = arith.mulf %93, %67 : vector<16x16xf32>
    %95 = vector.broadcast %80 : f32 to vector<16x16xf32>
    %96 = arith.mulf %95, %16 : vector<16x16xf32>
    %97 = arith.addf %94, %96 : vector<16x16xf32>
    %98 = vector.broadcast %83 : f32 to vector<16x16xf32>
    %99 = arith.mulf %98, %75 : vector<16x16xf32>
    %100 = arith.addf %97, %99 : vector<16x16xf32>
    %101 = vector.broadcast %78 : f32 to vector<16x16xf32>
    %102 = arith.mulf %101, %67 : vector<16x16xf32>
    %103 = vector.broadcast %81 : f32 to vector<16x16xf32>
    %104 = arith.mulf %103, %16 : vector<16x16xf32>
    %105 = arith.addf %102, %104 : vector<16x16xf32>
    %106 = vector.broadcast %84 : f32 to vector<16x16xf32>
    %107 = arith.mulf %106, %75 : vector<16x16xf32>
    %108 = arith.addf %105, %107 : vector<16x16xf32>
    %c0_i32_45 = arith.constant 0 : i32
    %109 = vector.broadcast %c0_i32_45 : i32 to vector<1x16xi32>
    %110 = arith.cmpi eq, %59, %109 : vector<1x16xi32>
    %c1_i32_46 = arith.constant 1 : i32
    %111 = tpu.dynamic_rotate %92 by %c1_i32_46 dim 1 : vector<16x16xf32>, i32 -> vector<16x16xf32>
    %cst_47 = arith.constant 0.000000e+00 : f32
    %112 = vector.shape_cast %110 : vector<1x16xi1> to vector<1x16xi1>
    %113 = vector.broadcast %112 : vector<1x16xi1> to vector<16x16xi1>
    %114 = vector.broadcast %cst_47 : f32 to vector<16x16xf32>
    %115 = arith.select %113, %114, %111 : vector<16x16xi1>, vector<16x16xf32>
    %c15_i32_48 = arith.constant 15 : i32
    %116 = vector.broadcast %c15_i32_48 : i32 to vector<1x16xi32>
    %117 = arith.cmpi eq, %59, %116 : vector<1x16xi32>
    %c15_i32_49 = arith.constant 15 : i32
    %118 = tpu.dynamic_rotate %108 by %c15_i32_49 dim 1 : vector<16x16xf32>, i32 -> vector<16x16xf32>
    %cst_50 = arith.constant 0.000000e+00 : f32
    %119 = vector.shape_cast %117 : vector<1x16xi1> to vector<1x16xi1>
    %120 = vector.broadcast %119 : vector<1x16xi1> to vector<16x16xi1>
    %121 = vector.broadcast %cst_50 : f32 to vector<16x16xf32>
    %122 = arith.select %120, %121, %118 : vector<16x16xi1>, vector<16x16xf32>
    %123 = arith.addf %100, %115 : vector<16x16xf32>
    %124 = arith.addf %123, %122 : vector<16x16xf32>
    %c0_51 = arith.constant 0 : index
    %125 = memref.load %arg3[%c0_51] : memref<8xf32, #tpu.memory_space<smem>>
    %126 = vector.broadcast %125 : f32 to vector<16x16xf32>
    %127 = arith.mulf %126, %124 : vector<16x16xf32>
    %c0_52 = arith.constant 0 : index
    %128 = memref.load %arg4[%c0_52] : memref<8xf32, #tpu.memory_space<smem>>
    %129 = vector.broadcast %128 : f32 to vector<16x16xf32>
    %130 = arith.addf %127, %129 : vector<16x16xf32>
    %cst_53 = arith.constant 3.000000e+00 : f32
    %131 = vector.broadcast %cst_53 : f32 to vector<16x16xf32>
    %132 = arith.addf %130, %131 : vector<16x16xf32>
    %cst_54 = arith.constant 0.000000e+00 : f32
    %cst_55 = arith.constant 6.000000e+00 : f32
    %133 = vector.broadcast %cst_54 : f32 to vector<16x16xf32>
    %134 = arith.maximumf %133, %132 : vector<16x16xf32>
    %135 = vector.broadcast %cst_55 : f32 to vector<16x16xf32>
    %136 = arith.minimumf %135, %134 : vector<16x16xf32>
    %137 = arith.mulf %130, %136 : vector<16x16xf32>
    %cst_56 = arith.constant 0.166666672 : f32
    %138 = vector.broadcast %cst_56 : f32 to vector<16x16xf32>
    %139 = arith.mulf %137, %138 : vector<16x16xf32>
    %c0_57 = arith.constant 0 : index
    %c0_58 = arith.constant 0 : index
    %c0_59 = arith.constant 0 : index
    %c0_60 = arith.constant 0 : index
    %140 = vector.load %arg6[%c0_57, %c0_58, %c0_59, %c0_60] : memref<1x8x16x16xf32, #tpu.memory_space<vmem>>, vector<1x1x16x16xf32>
    %141 = vector.shape_cast %140 : vector<1x1x16x16xf32> to vector<16x16xf32>
    %142 = vector.shape_cast %139 : vector<16x16xf32> to vector<1x1x16x16xf32>
    tpu.vector_store %arg6[%c0_57, %c0_58, %c0_59, %c0_60], %142 {strides = array<i32>} : memref<1x8x16x16xf32, #tpu.memory_space<vmem>>, vector<1x1x16x16xf32>,
    %c1_61 = arith.constant 1 : index
    %143 = memref.load %arg3[%c1_61] : memref<8xf32, #tpu.memory_space<smem>>
    %144 = vector.broadcast %143 : f32 to vector<16x16xf32>
    %145 = arith.mulf %144, %124 : vector<16x16xf32>
    %c1_62 = arith.constant 1 : index
    %146 = memref.load %arg4[%c1_62] : memref<8xf32, #tpu.memory_space<smem>>
    %147 = vector.broadcast %146 : f32 to vector<16x16xf32>
    %148 = arith.addf %145, %147 : vector<16x16xf32>
    %cst_63 = arith.constant 3.000000e+00 : f32
    %149 = vector.broadcast %cst_63 : f32 to vector<16x16xf32>
    %150 = arith.addf %148, %149 : vector<16x16xf32>
    %cst_64 = arith.constant 0.000000e+00 : f32
    %cst_65 = arith.constant 6.000000e+00 : f32
    %151 = vector.broadcast %cst_64 : f32 to vector<16x16xf32>
    %152 = arith.maximumf %151, %150 : vector<16x16xf32>
    %153 = vector.broadcast %cst_65 : f32 to vector<16x16xf32>
    %154 = arith.minimumf %153, %152 : vector<16x16xf32>
    %155 = arith.mulf %148, %154 : vector<16x16xf32>
    %cst_66 = arith.constant 0.166666672 : f32
    %156 = vector.broadcast %cst_66 : f32 to vector<16x16xf32>
    %157 = arith.mulf %155, %156 : vector<16x16xf32>
    %c0_67 = arith.constant 0 : index
    %c1_68 = arith.constant 1 : index
    %c0_69 = arith.constant 0 : index
    %c0_70 = arith.constant 0 : index
    %158 = vector.load %arg6[%c0_67, %c1_68, %c0_69, %c0_70] : memref<1x8x16x16xf32, #tpu.memory_space<vmem>>, vector<1x1x16x16xf32>
    %159 = vector.shape_cast %158 : vector<1x1x16x16xf32> to vector<16x16xf32>
    %160 = vector.shape_cast %157 : vector<16x16xf32> to vector<1x1x16x16xf32>
    tpu.vector_store %arg6[%c0_67, %c1_68, %c0_69, %c0_70], %160 {strides = array<i32>} : memref<1x8x16x16xf32, #tpu.memory_space<vmem>>, vector<1x1x16x16xf32>,
    %c2_71 = arith.constant 2 : index
    %161 = memref.load %arg3[%c2_71] : memref<8xf32, #tpu.memory_space<smem>>
    %162 = vector.broadcast %161 : f32 to vector<16x16xf32>
    %163 = arith.mulf %162, %124 : vector<16x16xf32>
    %c2_72 = arith.constant 2 : index
    %164 = memref.load %arg4[%c2_72] : memref<8xf32, #tpu.memory_space<smem>>
    %165 = vector.broadcast %164 : f32 to vector<16x16xf32>
    %166 = arith.addf %163, %165 : vector<16x16xf32>
    %cst_73 = arith.constant 3.000000e+00 : f32
    %167 = vector.broadcast %cst_73 : f32 to vector<16x16xf32>
    %168 = arith.addf %166, %167 : vector<16x16xf32>
    %cst_74 = arith.constant 0.000000e+00 : f32
    %cst_75 = arith.constant 6.000000e+00 : f32
    %169 = vector.broadcast %cst_74 : f32 to vector<16x16xf32>
    %170 = arith.maximumf %169, %168 : vector<16x16xf32>
    %171 = vector.broadcast %cst_75 : f32 to vector<16x16xf32>
    %172 = arith.minimumf %171, %170 : vector<16x16xf32>
    %173 = arith.mulf %166, %172 : vector<16x16xf32>
    %cst_76 = arith.constant 0.166666672 : f32
    %174 = vector.broadcast %cst_76 : f32 to vector<16x16xf32>
    %175 = arith.mulf %173, %174 : vector<16x16xf32>
    %c0_77 = arith.constant 0 : index
    %c2_78 = arith.constant 2 : index
    %c0_79 = arith.constant 0 : index
    %c0_80 = arith.constant 0 : index
    %176 = vector.load %arg6[%c0_77, %c2_78, %c0_79, %c0_80] : memref<1x8x16x16xf32, #tpu.memory_space<vmem>>, vector<1x1x16x16xf32>
    %177 = vector.shape_cast %176 : vector<1x1x16x16xf32> to vector<16x16xf32>
    %178 = vector.shape_cast %175 : vector<16x16xf32> to vector<1x1x16x16xf32>
    tpu.vector_store %arg6[%c0_77, %c2_78, %c0_79, %c0_80], %178 {strides = array<i32>} : memref<1x8x16x16xf32, #tpu.memory_space<vmem>>, vector<1x1x16x16xf32>,
    %c3_81 = arith.constant 3 : index
    %179 = memref.load %arg3[%c3_81] : memref<8xf32, #tpu.memory_space<smem>>
    %180 = vector.broadcast %179 : f32 to vector<16x16xf32>
    %181 = arith.mulf %180, %124 : vector<16x16xf32>
    %c3_82 = arith.constant 3 : index
    %182 = memref.load %arg4[%c3_82] : memref<8xf32, #tpu.memory_space<smem>>
    %183 = vector.broadcast %182 : f32 to vector<16x16xf32>
    %184 = arith.addf %181, %183 : vector<16x16xf32>
    %cst_83 = arith.constant 3.000000e+00 : f32
    %185 = vector.broadcast %cst_83 : f32 to vector<16x16xf32>
    %186 = arith.addf %184, %185 : vector<16x16xf32>
    %cst_84 = arith.constant 0.000000e+00 : f32
    %cst_85 = arith.constant 6.000000e+00 : f32
    %187 = vector.broadcast %cst_84 : f32 to vector<16x16xf32>
    %188 = arith.maximumf %187, %186 : vector<16x16xf32>
    %189 = vector.broadcast %cst_85 : f32 to vector<16x16xf32>
    %190 = arith.minimumf %189, %188 : vector<16x16xf32>
    %191 = arith.mulf %184, %190 : vector<16x16xf32>
    %cst_86 = arith.constant 0.166666672 : f32
    %192 = vector.broadcast %cst_86 : f32 to vector<16x16xf32>
    %193 = arith.mulf %191, %192 : vector<16x16xf32>
    %c0_87 = arith.constant 0 : index
    %c3_88 = arith.constant 3 : index
    %c0_89 = arith.constant 0 : index
    %c0_90 = arith.constant 0 : index
    %194 = vector.load %arg6[%c0_87, %c3_88, %c0_89, %c0_90] : memref<1x8x16x16xf32, #tpu.memory_space<vmem>>, vector<1x1x16x16xf32>
    %195 = vector.shape_cast %194 : vector<1x1x16x16xf32> to vector<16x16xf32>
    %196 = vector.shape_cast %193 : vector<16x16xf32> to vector<1x1x16x16xf32>
    tpu.vector_store %arg6[%c0_87, %c3_88, %c0_89, %c0_90], %196 {strides = array<i32>} : memref<1x8x16x16xf32, #tpu.memory_space<vmem>>, vector<1x1x16x16xf32>,
    %c4_91 = arith.constant 4 : index
    %197 = memref.load %arg3[%c4_91] : memref<8xf32, #tpu.memory_space<smem>>
    %198 = vector.broadcast %197 : f32 to vector<16x16xf32>
    %199 = arith.mulf %198, %124 : vector<16x16xf32>
    %c4_92 = arith.constant 4 : index
    %200 = memref.load %arg4[%c4_92] : memref<8xf32, #tpu.memory_space<smem>>
    %201 = vector.broadcast %200 : f32 to vector<16x16xf32>
    %202 = arith.addf %199, %201 : vector<16x16xf32>
    %cst_93 = arith.constant 3.000000e+00 : f32
    %203 = vector.broadcast %cst_93 : f32 to vector<16x16xf32>
    %204 = arith.addf %202, %203 : vector<16x16xf32>
    %cst_94 = arith.constant 0.000000e+00 : f32
    %cst_95 = arith.constant 6.000000e+00 : f32
    %205 = vector.broadcast %cst_94 : f32 to vector<16x16xf32>
    %206 = arith.maximumf %205, %204 : vector<16x16xf32>
    %207 = vector.broadcast %cst_95 : f32 to vector<16x16xf32>
    %208 = arith.minimumf %207, %206 : vector<16x16xf32>
    %209 = arith.mulf %202, %208 : vector<16x16xf32>
    %cst_96 = arith.constant 0.166666672 : f32
    %210 = vector.broadcast %cst_96 : f32 to vector<16x16xf32>
    %211 = arith.mulf %209, %210 : vector<16x16xf32>
    %c0_97 = arith.constant 0 : index
    %c4_98 = arith.constant 4 : index
    %c0_99 = arith.constant 0 : index
    %c0_100 = arith.constant 0 : index
    %212 = vector.load %arg6[%c0_97, %c4_98, %c0_99, %c0_100] : memref<1x8x16x16xf32, #tpu.memory_space<vmem>>, vector<1x1x16x16xf32>
    %213 = vector.shape_cast %212 : vector<1x1x16x16xf32> to vector<16x16xf32>
    %214 = vector.shape_cast %211 : vector<16x16xf32> to vector<1x1x16x16xf32>
    tpu.vector_store %arg6[%c0_97, %c4_98, %c0_99, %c0_100], %214 {strides = array<i32>} : memref<1x8x16x16xf32, #tpu.memory_space<vmem>>, vector<1x1x16x16xf32>,
    %c5_101 = arith.constant 5 : index
    %215 = memref.load %arg3[%c5_101] : memref<8xf32, #tpu.memory_space<smem>>
    %216 = vector.broadcast %215 : f32 to vector<16x16xf32>
    %217 = arith.mulf %216, %124 : vector<16x16xf32>
    %c5_102 = arith.constant 5 : index
    %218 = memref.load %arg4[%c5_102] : memref<8xf32, #tpu.memory_space<smem>>
    %219 = vector.broadcast %218 : f32 to vector<16x16xf32>
    %220 = arith.addf %217, %219 : vector<16x16xf32>
    %cst_103 = arith.constant 3.000000e+00 : f32
    %221 = vector.broadcast %cst_103 : f32 to vector<16x16xf32>
    %222 = arith.addf %220, %221 : vector<16x16xf32>
    %cst_104 = arith.constant 0.000000e+00 : f32
    %cst_105 = arith.constant 6.000000e+00 : f32
    %223 = vector.broadcast %cst_104 : f32 to vector<16x16xf32>
    %224 = arith.maximumf %223, %222 : vector<16x16xf32>
    %225 = vector.broadcast %cst_105 : f32 to vector<16x16xf32>
    %226 = arith.minimumf %225, %224 : vector<16x16xf32>
    %227 = arith.mulf %220, %226 : vector<16x16xf32>
    %cst_106 = arith.constant 0.166666672 : f32
    %228 = vector.broadcast %cst_106 : f32 to vector<16x16xf32>
    %229 = arith.mulf %227, %228 : vector<16x16xf32>
    %c0_107 = arith.constant 0 : index
    %c5_108 = arith.constant 5 : index
    %c0_109 = arith.constant 0 : index
    %c0_110 = arith.constant 0 : index
    %230 = vector.load %arg6[%c0_107, %c5_108, %c0_109, %c0_110] : memref<1x8x16x16xf32, #tpu.memory_space<vmem>>, vector<1x1x16x16xf32>
    %231 = vector.shape_cast %230 : vector<1x1x16x16xf32> to vector<16x16xf32>
    %232 = vector.shape_cast %229 : vector<16x16xf32> to vector<1x1x16x16xf32>
    tpu.vector_store %arg6[%c0_107, %c5_108, %c0_109, %c0_110], %232 {strides = array<i32>} : memref<1x8x16x16xf32, #tpu.memory_space<vmem>>, vector<1x1x16x16xf32>,
    %c6_111 = arith.constant 6 : index
    %233 = memref.load %arg3[%c6_111] : memref<8xf32, #tpu.memory_space<smem>>
    %234 = vector.broadcast %233 : f32 to vector<16x16xf32>
    %235 = arith.mulf %234, %124 : vector<16x16xf32>
    %c6_112 = arith.constant 6 : index
    %236 = memref.load %arg4[%c6_112] : memref<8xf32, #tpu.memory_space<smem>>
    %237 = vector.broadcast %236 : f32 to vector<16x16xf32>
    %238 = arith.addf %235, %237 : vector<16x16xf32>
    %cst_113 = arith.constant 3.000000e+00 : f32
    %239 = vector.broadcast %cst_113 : f32 to vector<16x16xf32>
    %240 = arith.addf %238, %239 : vector<16x16xf32>
    %cst_114 = arith.constant 0.000000e+00 : f32
    %cst_115 = arith.constant 6.000000e+00 : f32
    %241 = vector.broadcast %cst_114 : f32 to vector<16x16xf32>
    %242 = arith.maximumf %241, %240 : vector<16x16xf32>
    %243 = vector.broadcast %cst_115 : f32 to vector<16x16xf32>
    %244 = arith.minimumf %243, %242 : vector<16x16xf32>
    %245 = arith.mulf %238, %244 : vector<16x16xf32>
    %cst_116 = arith.constant 0.166666672 : f32
    %246 = vector.broadcast %cst_116 : f32 to vector<16x16xf32>
    %247 = arith.mulf %245, %246 : vector<16x16xf32>
    %c0_117 = arith.constant 0 : index
    %c6_118 = arith.constant 6 : index
    %c0_119 = arith.constant 0 : index
    %c0_120 = arith.constant 0 : index
    %248 = vector.load %arg6[%c0_117, %c6_118, %c0_119, %c0_120] : memref<1x8x16x16xf32, #tpu.memory_space<vmem>>, vector<1x1x16x16xf32>
    %249 = vector.shape_cast %248 : vector<1x1x16x16xf32> to vector<16x16xf32>
    %250 = vector.shape_cast %247 : vector<16x16xf32> to vector<1x1x16x16xf32>
    tpu.vector_store %arg6[%c0_117, %c6_118, %c0_119, %c0_120], %250 {strides = array<i32>} : memref<1x8x16x16xf32, #tpu.memory_space<vmem>>, vector<1x1x16x16xf32>,
    %c7_121 = arith.constant 7 : index
    %251 = memref.load %arg3[%c7_121] : memref<8xf32, #tpu.memory_space<smem>>
    %252 = vector.broadcast %251 : f32 to vector<16x16xf32>
    %253 = arith.mulf %252, %124 : vector<16x16xf32>
    %c7_122 = arith.constant 7 : index
    %254 = memref.load %arg4[%c7_122] : memref<8xf32, #tpu.memory_space<smem>>
    %255 = vector.broadcast %254 : f32 to vector<16x16xf32>
    %256 = arith.addf %253, %255 : vector<16x16xf32>
    %cst_123 = arith.constant 3.000000e+00 : f32
    %257 = vector.broadcast %cst_123 : f32 to vector<16x16xf32>
    %258 = arith.addf %256, %257 : vector<16x16xf32>
    %cst_124 = arith.constant 0.000000e+00 : f32
    %cst_125 = arith.constant 6.000000e+00 : f32
    %259 = vector.broadcast %cst_124 : f32 to vector<16x16xf32>
    %260 = arith.maximumf %259, %258 : vector<16x16xf32>
    %261 = vector.broadcast %cst_125 : f32 to vector<16x16xf32>
    %262 = arith.minimumf %261, %260 : vector<16x16xf32>
    %263 = arith.mulf %256, %262 : vector<16x16xf32>
    %cst_126 = arith.constant 0.166666672 : f32
    %264 = vector.broadcast %cst_126 : f32 to vector<16x16xf32>
    %265 = arith.mulf %263, %264 : vector<16x16xf32>
    %c0_127 = arith.constant 0 : index
    %c7_128 = arith.constant 7 : index
    %c0_129 = arith.constant 0 : index
    %c0_130 = arith.constant 0 : index
    %266 = vector.load %arg6[%c0_127, %c7_128, %c0_129, %c0_130] : memref<1x8x16x16xf32, #tpu.memory_space<vmem>>, vector<1x1x16x16xf32>
    %267 = vector.shape_cast %266 : vector<1x1x16x16xf32> to vector<16x16xf32>
    %268 = vector.shape_cast %265 : vector<16x16xf32> to vector<1x1x16x16xf32>
    tpu.vector_store %arg6[%c0_127, %c7_128, %c0_129, %c0_130], %268 {strides = array<i32>} : memref<1x8x16x16xf32, #tpu.memory_space<vmem>>, vector<1x1x16x16xf32>,
    return
  }
  func.func @transform_0(%arg0: i32, %arg1: i32) -> i32 {
    %c0_i32 = arith.constant 0 : i32
    %c0_i32_0 = arith.constant 0 : i32
    return %c0_i32 : i32
  }
  func.func @transform_1(%arg0: i32, %arg1: i32) -> i32 {
    %c0_i32 = arith.constant 0 : i32
    %c0_i32_0 = arith.constant 0 : i32
    return %c0_i32 : i32
  }
  func.func @transform_2(%arg0: i32, %arg1: i32) -> i32 {
    %c0_i32 = arith.constant 0 : i32
    %c0_i32_0 = arith.constant 0 : i32
    return %c0_i32 : i32
  }
  func.func @transform_3(%arg0: i32, %arg1: i32) -> (i32, i32, i32, i32) {
    %c0_i32 = arith.constant 0 : i32
    %c0_i32_0 = arith.constant 0 : i32
    %c0_i32_1 = arith.constant 0 : i32
    %c0_i32_2 = arith.constant 0 : i32
    return %arg0, %c0_i32, %c0_i32_0, %c0_i32_1 : i32, i32, i32, i32
  }
  func.func @transform_4(%arg0: i32, %arg1: i32) -> (i32, i32, i32, i32) {
    %c0_i32 = arith.constant 0 : i32
    %c0_i32_0 = arith.constant 0 : i32
    %c0_i32_1 = arith.constant 0 : i32
    return %arg0, %c0_i32, %arg1, %c0_i32_0 : i32, i32, i32, i32
  }
}

</mosaic_0001>

<llo_original>
// kernel: squeeze.1
$region0: #{squeeze.1}
  %s0 = inlined_call_operand.vmem [shape: f32[3,3], index: 0, kind: input, shape index: {}]
  %s1 = inlined_call_operand.vmem [shape: f32[9], index: 1, kind: output, shape index: {}]
  $region1: #{squeeze.1} parent=0
    #allocation0 [shape = 'u8[4096]{0}', space=vmem, size = 0x1000, scoped, tag = 'scoped mem for output reshape']
    #allocation1 [shape = 'u8[4096]{0}', space=vmem, size = 0x1000, scoped, tag = 'scoped mem for input reshape']
    %s3 = sshll.u32 1, 4
    %s4 = ssub.s32 %s3, 1
    %v5 = vld [vmem:[%s0] sm:%s4]
    %6 = vst [vmem:[#allocation1] sm:%s4] %v5
    %v7 = vld [vmem:[#allocation1] sm:$0x1]
    %vm8 = vcmask 23552
    %9 = vst.msk [vmem:[#allocation0] sm:$0x1] %vm8, %v7
    %s10 = scalar_lea.vmem [#allocation1], 2
    %v11 = vld [vmem:[%s10] sm:$0x1]
    %12 = vrot.lane.b32.xlu0 %v11, 6
    %v13 = vpop.permute.xlu0 %12
    %vm14 = vcmask 72752
    %15 = vst.msk [vmem:[#allocation0] sm:$0x1] %vm14, %v13
    %s16 = scalar_lea.vmem [#allocation1], 1
    %v17 = vld [vmem:[%s16] sm:$0x1]
    %18 = vrot.lane.b32.xlu0 %v17, 3
    %v19 = vpop.permute.xlu0 %18
    %vm20 = vcmask 48152
    %21 = vst.msk [vmem:[#allocation0] sm:$0x1] %vm20, %v19
    %s23 = sshll.u32 1, 1
    %s24 = ssub.s32 %s23, 1
    %v26 = vld [vmem:[#allocation0] sm:%s24]
    %s27 = sshll.u32 1, 1
    %s28 = ssub.s32 %s27, 1
    %29 = vst [vmem:[%s1] sm:%s28] %v26

// kernel: sharpen_conv_forward.1
$region0: #{sharpen_conv_forward.1}
  #allocation0 [shape = 'u32[]', space=smem, size = 0x4, offset = 0x4, fixed_abs, tag = 'smem constant byte address 0x4 - core index']
  #allocation1 [shape = 'u32[144,128]{1,0:T(1,128)}', space=vmem, size = 0x12000, scoped, tag = 'internal scratch']
  %s0 = inlined_call_operand.vmem [shape: f32[9], index: 0, kind: input, shape index: {}]
  %s1 = inlined_call_operand.vmem [shape: f32[8], index: 1, kind: input, shape index: {}]
  %s2 = inlined_call_operand.vmem [shape: f32[8], index: 2, kind: input, shape index: {}]
  %s3 = inlined_call_operand.hbm [shape: f32[2,4,16,16], index: 3, kind: input, shape index: {}]
  %s4 = inlined_call_operand.hbm [shape: f32[2,8,16,16], index: 4, kind: output, shape index: {}]
  %s5 = sld [smem:[#allocation0]]
  $region65: #{sharpen_conv_forward.1} parent=0
    _
  %s7 = ssub.s32 1, %s5
  %s8 = scalar_select 0, %s7, %s5
  $region1: #{sharpen_conv_forward.1} parent=0
    #allocation2 [shape = 'u8[512]{0}', space=smem, size = 0x200, scoped, tag = 'input window, operand 0, single buffered']
    #allocation3 [shape = 's32[2]{0}', space=sflag, size = 0x8, scoped, tag = 'scoped memory for sharpen_conv_forward.1']
    #allocation4 [shape = 's32[2]{0}', space=sflag, size = 0x8, scoped, tag = 'scoped memory for sharpen_conv_forward.1']
    #allocation5 [shape = 's32[2]{0}', space=sflag, size = 0x8, scoped, tag = 'scoped memory for sharpen_conv_forward.1']
    #allocation6 [shape = 'u8[512]{0}', space=smem, size = 0x200, scoped, tag = 'input window, operand 1, single buffered']
    #allocation7 [shape = 's32[1]{0}', space=sflag, size = 0x4, scoped, tag = 'scoped memory for sharpen_conv_forward.1']
    #allocation8 [shape = 'u8[512]{0}', space=smem, size = 0x200, scoped, tag = 'input window, operand 2, single buffered']
    #allocation9 [shape = 'u8[65536]{0}', space=vmem, size = 0x10000, scoped, tag = 'input window, operand 3']
    #allocation10 [shape = 'u8[131072]{0}', space=vmem, size = 0x20000, scoped, tag = 'output window, operand 0']
    %9 = vsyncpa [#allocation5], 0
    %10 = vsyncpa [#allocation7], 0
    %11 = vsyncpa [#allocation3], 0
    %s12 = scalar_lea.sflag [#allocation3], 1
    %13 = vsyncpa %s12, 0
    %14 = vsyncpa [#allocation4], 0
    %s15 = scalar_lea.sflag [#allocation4], 1
    %16 = vsyncpa %s15, 0
    loop: start=0, step=1, limit=4
    $region2: #{sharpen_conv_forward.1} parent=1 // loop_pre_header
      _
    $region3: #{sharpen_conv_forward.1} parent=1 // loop_header
      %s18 = sphi 0, %s22
      %p19 = scmp.ge.s32.totalorder %s18, 4
      %s25 = sphi 0, %s37
      %s26 = sphi 0, %s33
      %s27 = sphi 0, %s25
      %s28 = sphi 0, %s26
      %s29 = sphi 0, %s27
      %s30 = sphi 0, %s28
      %s38 = sphi 0, %s38
      %s40 = sphi 0, %s38
      %s41 = sphi 0, %s40
      %s55 = sphi 0, %s41
      %s59 = sphi 0, %s59
      %s61 = sphi 0, %s59
      %s62 = sphi 0, %s61
      %s76 = sphi 0, %s62
      %s80 = sphi 0, %s80
      %s82 = sphi 0, %s80
      %s83 = sphi 0, %s82
      %s97 = sphi 0, %s83
      %s103 = sphi 0, %s105
      %s106 = sphi 0, %s103
      %s107 = sphi 0, %s106
      %s123 = sphi 0, %s107
      %s131 = sphi 0, %s133
      %s134 = sphi 0, %s131
      %s135 = sphi 0, %s134
      %s151 = sphi 0, %s135
    $region4: #{sharpen_conv_forward.1} parent=1 // loop_header_branch
      %21 = sbr.rel (%p19) target = $region8
    $region5: #{sharpen_conv_forward.1} parent=1 // loop_body
      %s23 = ssub.s32 %s18, 1
      %s24 = ssub.s32 %s18, 2
      %s31 = sadd.s32 1, %s26
      %p32 = scmp.ge.s32.totalorder %s31, 1
      %s33 = scalar_select %p32, 0, %s31
      %s34 = sadd.s32 1, %s25
      %s35 = scalar_select %p32, %s34, %s25
      %p36 = scmp.ge.s32.totalorder %s35, 2
      %s37 = scalar_select %p36, 0, %s35
      %s39 = sadd.s32 %s38, 1
      %p42 = scmp.eq.s32.totalorder %s18, 1
      %p43 = scmp.ne.s32.totalorder %s38, %s40
      %p44 = scmp.eq.s32.totalorder %s18, 0
      %p45 = por %p43, %p44
      %p46 = scmp.ne.s32.totalorder %s38, %s40
      %p47 = scmp.eq.s32.totalorder %s23, 1
      %p48 = por %p46, %p47
      %p49 = scmp.ne.s32.totalorder %s40, %s41
      %p50 = scmp.eq.s32.totalorder %s23, 0
      %p51 = por %p49, %p50
      %p52 = scmp.ne.s32.totalorder %s40, %s41
      %p53 = scmp.eq.s32.totalorder %s24, 1
      %p54 = por %p52, %p53
      %p56 = scmp.ne.s32.totalorder %s41, %s55
      %p57 = scmp.eq.s32.totalorder %s24, 0
      %p58 = por %p56, %p57
      %s60 = sadd.s32 %s59, 1
      %p63 = scmp.eq.s32.totalorder %s18, 1
      %p64 = scmp.ne.s32.totalorder %s59, %s61
      %p65 = scmp.eq.s32.totalorder %s18, 0
      %p66 = por %p64, %p65
      %p67 = scmp.ne.s32.totalorder %s59, %s61
      %p68 = scmp.eq.s32.totalorder %s23, 1
      %p69 = por %p67, %p68
      %p70 = scmp.ne.s32.totalorder %s61, %s62
      %p71 = scmp.eq.s32.totalorder %s23, 0
      %p72 = por %p70, %p71
      %p73 = scmp.ne.s32.totalorder %s61, %s62
      %p74 = scmp.eq.s32.totalorder %s24, 1
      %p75 = por %p73, %p74
      %p77 = scmp.ne.s32.totalorder %s62, %s76
      %p78 = scmp.eq.s32.totalorder %s24, 0
      %p79 = por %p77, %p78
      %s81 = sadd.s32 %s80, 1
      %p84 = scmp.eq.s32.totalorder %s18, 1
      %p85 = scmp.ne.s32.totalorder %s80, %s82
      %p86 = scmp.eq.s32.totalorder %s18, 0
      %p87 = por %p85, %p86
      %p88 = scmp.ne.s32.totalorder %s80, %s82
      %p89 = scmp.eq.s32.totalorder %s23, 1
      %p90 = por %p88, %p89
      %p91 = scmp.ne.s32.totalorder %s82, %s83
      %p92 = scmp.eq.s32.totalorder %s23, 0
      %p93 = por %p91, %p92
      %p94 = scmp.ne.s32.totalorder %s82, %s83
      %p95 = scmp.eq.s32.totalorder %s24, 1
      %p96 = por %p94, %p95
      %p98 = scmp.ne.s32.totalorder %s83, %s97
      %p99 = scmp.eq.s32.totalorder %s24, 0
      %p100 = por %p98, %p99
      %s101 = ssub.s32 %s25, %s37
      %p102 = scmp.eq.s32.totalorder %s101, 0
      %s104 = sadd.s32 %s103, 1
      %s105 = scalar_select %p102, %s103, %s104
      %p108 = pneg %p102
      %p109 = scmp.eq.s32.totalorder %s18, 1
      %p110 = por %p108, %p109
      %p111 = scmp.ne.s32.totalorder %s103, %s106
      %p112 = scmp.eq.s32.totalorder %s18, 0
      %p113 = por %p111, %p112
      %p114 = scmp.ne.s32.totalorder %s103, %s106
      %p115 = scmp.eq.s32.totalorder %s23, 1
      %p116 = por %p114, %p115
      %p117 = scmp.ne.s32.totalorder %s106, %s107
      %p118 = scmp.eq.s32.totalorder %s23, 0
      %p119 = por %p117, %p118
      %p120 = scmp.ne.s32.totalorder %s106, %s107
      %p121 = scmp.eq.s32.totalorder %s24, 1
      %p122 = por %p120, %p121
      %p124 = scmp.ne.s32.totalorder %s107, %s123
      %p125 = scmp.eq.s32.totalorder %s24, 0
      %p126 = por %p124, %p125
      %s127 = ssub.s32 %s25, %s37
      %s128 = ssub.s32 %s26, %s33
      %s129 = sor.u32 %s127, %s128
      %p130 = scmp.eq.s32.totalorder %s129, 0
      %s132 = sadd.s32 %s131, 1
      %s133 = scalar_select %p130, %s131, %s132
      %p136 = pneg %p130
      %p137 = scmp.eq.s32.totalorder %s18, 1
      %p138 = por %p136, %p137
      %p139 = scmp.ne.s32.totalorder %s131, %s134
      %p140 = scmp.eq.s32.totalorder %s18, 0
      %p141 = por %p139, %p140
      %p142 = scmp.ne.s32.totalorder %s131, %s134
      %p143 = scmp.eq.s32.totalorder %s23, 1
      %p144 = por %p142, %p143
      %p145 = scmp.ne.s32.totalorder %s134, %s135
      %p146 = scmp.eq.s32.totalorder %s23, 0
      %p147 = por %p145, %p146
      %p148 = scmp.ne.s32.totalorder %s134, %s135
      %p149 = scmp.eq.s32.totalorder %s24, 1
      %p150 = por %p148, %p149
      %p152 = scmp.ne.s32.totalorder %s135, %s151
      %p153 = scmp.eq.s32.totalorder %s24, 0
      %p154 = por %p152, %p153
      %p155 = scmp.le.s32.totalorder 1, %s18
      %p156 = scmp.lt.s32.totalorder %s18, 3
      %p157 = pnand %p155, %p156
      %p158 = pneg %p157
      // Predicated region
      $region9: #{sharpen_conv_forward.1} parent=5 // pred_check
        _
      $region10: #{sharpen_conv_forward.1} parent=5 // pred_check_branch
        %160 = sbr.rel (%p157) target = $region12
      $region11: #{sharpen_conv_forward.1} parent=5 // pred_region
        %s161 = ssub.s32 %s18, 1
        // Predicated region
        $region13: #{sharpen_conv_forward.1} parent=11 // pred_check
          %p162 = pneg %p51
        $region14: #{sharpen_conv_forward.1} parent=11 // pred_check_branch
          %164 = sbr.rel (%p162) target = $region16
        $region15: #{sharpen_conv_forward.1} parent=11 // pred_region
          %s166 = ssub.s32 16, 16
          %167 = vsyncadd [#allocation5], %s166
          %s169 = sshll.u32 %s0, 4
          %s170 = int_to_ptr.vmem [resolvable:$true] %s169
          %172 = dma.vmem_to_smem %s170, 16, [#allocation2], [#allocation5]
        $region16: #{sharpen_conv_forward.1} parent=11 // pred_fallthru
          _
        // Predicated region
        $region17: #{sharpen_conv_forward.1} parent=11 // pred_check
          %p173 = pneg %p72
        $region18: #{sharpen_conv_forward.1} parent=11 // pred_check_branch
          %175 = sbr.rel (%p173) target = $region20
        $region19: #{sharpen_conv_forward.1} parent=11 // pred_region
          %s177 = ssub.s32 16, 16
          %178 = vsyncadd [#allocation7], %s177
          %s180 = sshll.u32 %s1, 4
          %s181 = int_to_ptr.vmem [resolvable:$true] %s180
          %183 = dma.vmem_to_smem %s181, 16, [#allocation6], [#allocation7]
        $region20: #{sharpen_conv_forward.1} parent=11 // pred_fallthru
          _
        // Predicated region
        $region21: #{sharpen_conv_forward.1} parent=11 // pred_check
          %p184 = pneg %p93
        $region22: #{sharpen_conv_forward.1} parent=11 // pred_check_branch
          %186 = sbr.rel (%p184) target = $region24
        $region23: #{sharpen_conv_forward.1} parent=11 // pred_region
          %s188 = ssub.s32 16, 16
          %189 = vsyncadd [#allocation7], %s188
          %s191 = sshll.u32 %s2, 4
          %s192 = int_to_ptr.vmem [resolvable:$true] %s191
          %194 = dma.vmem_to_smem %s192, 16, [#allocation8], [#allocation7]
        $region24: #{sharpen_conv_forward.1} parent=11 // pred_fallthru
          _
      $region12: #{sharpen_conv_forward.1} parent=5 // pred_fallthru
        _
      %p195 = scmp.lt.s32.totalorder %s18, 2
      // Predicated region
      $region25: #{sharpen_conv_forward.1} parent=5 // pred_check
        %p196 = pneg %p195
      $region26: #{sharpen_conv_forward.1} parent=5 // pred_check_branch
        %198 = sbr.rel (%p196) target = $region28
      $region27: #{sharpen_conv_forward.1} parent=5 // pred_region
        // Predicated region
        $region29: #{sharpen_conv_forward.1} parent=27 // pred_check
          %p199 = pneg %p113
        $region30: #{sharpen_conv_forward.1} parent=27 // pred_check_branch
          %201 = sbr.rel (%p199) target = $region32
        $region31: #{sharpen_conv_forward.1} parent=27 // pred_region
          %s202 = sand.u32 %s103, 1
          %s203 = scalar_lea.sflag [#allocation3], %s202
          %s204 = sand.u32 %s103, 1
          %s205 = smul.addr %s204, 64
          %s206 = scalar_lea.vmem [#allocation9], %s205
          %s208 = ssub.s32 1024, 1024
          %209 = vsyncadd %s203, %s208
          %s210 = smul.addr %s25, 8
          %s211 = smul.addr %s210, 128
          %s212 = scalar_lea.hbm %s3, %s211
          %s213 = sshll.u32 %s206, 4
          %s214 = int_to_ptr.vmem [resolvable:$true] %s213
          %219 = dma.hbm_to_vmem [thread:$0]  %s212, 1024, %s214, %s203, 128, 128, 8
        $region32: #{sharpen_conv_forward.1} parent=27 // pred_fallthru
          _
      $region28: #{sharpen_conv_forward.1} parent=5 // pred_fallthru
        _
      %p220 = scmp.le.s32.totalorder 1, %s18
      %p221 = scmp.lt.s32.totalorder %s18, 3
      %p222 = pnand %p220, %p221
      %p223 = pneg %p222
      // Predicated region
      $region33: #{sharpen_conv_forward.1} parent=5 // pred_check
        _
      $region34: #{sharpen_conv_forward.1} parent=5 // pred_check_branch
        %225 = sbr.rel (%p222) target = $region36
      $region35: #{sharpen_conv_forward.1} parent=5 // pred_region
        %s226 = ssub.s32 %s18, 1
        // Predicated region
        $region37: #{sharpen_conv_forward.1} parent=35 // pred_check
          %p227 = pneg %p51
        $region38: #{sharpen_conv_forward.1} parent=35 // pred_check_branch
          %229 = sbr.rel (%p227) target = $region40
        $region39: #{sharpen_conv_forward.1} parent=35 // pred_region
          %230 = dma.done [#allocation5], 16
        $region40: #{sharpen_conv_forward.1} parent=35 // pred_fallthru
          _
        // Predicated region
        $region41: #{sharpen_conv_forward.1} parent=35 // pred_check
          %p231 = pneg %p72
        $region42: #{sharpen_conv_forward.1} parent=35 // pred_check_branch
          %233 = sbr.rel (%p231) target = $region44
        $region43: #{sharpen_conv_forward.1} parent=35 // pred_region
          %234 = dma.done [#allocation7], 16
        $region44: #{sharpen_conv_forward.1} parent=35 // pred_fallthru
          _
        // Predicated region
        $region45: #{sharpen_conv_forward.1} parent=35 // pred_check
          %p235 = pneg %p93
        $region46: #{sharpen_conv_forward.1} parent=35 // pred_check_branch
          %237 = sbr.rel (%p235) target = $region48
        $region47: #{sharpen_conv_forward.1} parent=35 // pred_region
          %238 = dma.done [#allocation7], 16
        $region48: #{sharpen_conv_forward.1} parent=35 // pred_fallthru
          _
        %s239 = sand.u32 %s106, 1
        %s240 = scalar_lea.sflag [#allocation3], %s239
        %s241 = sand.u32 %s106, 1
        %s242 = smul.addr %s241, 64
        %s243 = scalar_lea.vmem [#allocation9], %s242
        // Predicated region
        $region49: #{sharpen_conv_forward.1} parent=35 // pred_check
          %p244 = pneg %p119
        $region50: #{sharpen_conv_forward.1} parent=35 // pred_check_branch
          %246 = sbr.rel (%p244) target = $region52
        $region51: #{sharpen_conv_forward.1} parent=35 // pred_region
          %247 = dma.done %s240, 1024
        $region52: #{sharpen_conv_forward.1} parent=35 // pred_fallthru
          _
        %248 = sfence
        %p249 = pneg %p51
        %p250 = pneg %p48
        %p251 = pneg %p72
        %p252 = pneg %p69
        %p253 = pneg %p93
        %p254 = pneg %p90
        %s255 = sand.u32 %s106, 1
        %s256 = scalar_lea.sflag [#allocation3], %s255
        %s257 = sand.u32 %s106, 1
        %s258 = smul.addr %s257, 64
        %s259 = scalar_lea.vmem [#allocation9], %s258
        %p260 = pneg %p119
        %p261 = pneg %p116
        %p262 = pneg %p147
        %p263 = pneg %p144
        %s264 = sand.u32 %s134, 1
        %s265 = scalar_lea.sflag [#allocation4], %s264
        %s266 = sand.u32 %s134, 1
        %s267 = smul.addr %s266, 128
        %s268 = scalar_lea.vmem [#allocation10], %s267
        %s269 = smul.u32 2, %s28
        %s270 = smul.u32 %s28, 16
        %s271 = scalar_lea.vmem %s243, %s270 [#allocation9]
        %v272 = vld [vmem:[%s271] sm:$0xff]
        %v273 = vld [vmem:[%s271 + $0x8] sm:$0xff]
        %s274 = sadd.s32 %s270, 16
        %s275 = scalar_lea.vmem %s243, %s274 [#allocation9]
        %v276 = vld [vmem:[%s275] sm:$0xff]
        %v277 = vld [vmem:[%s275 + $0x8] sm:$0xff]
        %v278 = vadd.f32 %v272, %v276
        %v279 = vadd.f32 %v273, %v277
        %s280 = sadd.s32 %s270, 32
        %s281 = scalar_lea.vmem %s243, %s280 [#allocation9]
        %v282 = vld [vmem:[%s281] sm:$0xff]
        %v283 = vld [vmem:[%s281 + $0x8] sm:$0xff]
        %v284 = vadd.f32 %v278, %v282
        %v285 = vadd.f32 %v279, %v283
        %s286 = sadd.s32 %s270, 48
        %s287 = scalar_lea.vmem %s243, %s286 [#allocation9]
        %v288 = vld [vmem:[%s287] sm:$0xff]
        %v289 = vld [vmem:[%s287 + $0x8] sm:$0xff]
        %v290 = vadd.f32 %v284, %v288
        %v291 = vadd.f32 %v285, %v289
        %s292 = ssub.s32 %s270, 1
        %p293 = scmp.gt.s32.totalorder %s292, 0
        %s294 = scalar_select %p293, %s292, 0
        %p295 = scmp.lt.s32.totalorder %s274, 15
        %s296 = scalar_select %p295, %s274, 15
        %s297 = scalar_lea.vmem %s243, %s294 [#allocation9]
        %v298 = vld [vmem:[%s297] sm:$0x1]
        %s299 = scalar_lea.vmem %s243, %s296 [#allocation9]
        %v300 = vld [vmem:[%s299] sm:$0x1]
        %s301 = sadd.s32 %s294, 16
        %s302 = scalar_lea.vmem %s243, %s301 [#allocation9]
        %v303 = vld [vmem:[%s302] sm:$0x1]
        %v304 = vadd.f32 %v298, %v303
        %s305 = sadd.s32 %s296, 16
        %s306 = scalar_lea.vmem %s243, %s305 [#allocation9]
        %v307 = vld [vmem:[%s306] sm:$0x1]
        %v308 = vadd.f32 %v300, %v307
        %s309 = sadd.s32 %s294, 32
        %s310 = scalar_lea.vmem %s243, %s309 [#allocation9]
        %v311 = vld [vmem:[%s310] sm:$0x1]
        %v312 = vadd.f32 %v304, %v311
        %s313 = sadd.s32 %s296, 32
        %s314 = scalar_lea.vmem %s243, %s313 [#allocation9]
        %v315 = vld [vmem:[%s314] sm:$0x1]
        %v316 = vadd.f32 %v308, %v315
        %s317 = sadd.s32 %s294, 48
        %s318 = scalar_lea.vmem %s243, %s317 [#allocation9]
        %v319 = vld [vmem:[%s318] sm:$0x1]
        %v320 = vadd.f32 %v312, %v319
        %s321 = sadd.s32 %s296, 48
        %s322 = scalar_lea.vmem %s243, %s321 [#allocation9]
        %v323 = vld [vmem:[%s322] sm:$0x1]
        %v324 = vadd.f32 %v316, %v323
        %p325 = scmp.gt.s32.totalorder %s270, 0
        %s326 = scalar_select %p325, 1, 0
        %v327 = vstv %s326
        %vm328 = vcmp.eq.s32.totalorder %v327, 1
        %v329 = vsel %vm328, %v320, 0.0
        %p330 = scmp.lt.s32.totalorder %s274, 16
        %s331 = scalar_select %p330, 1, 0
        %v332 = vstv %s331
        %vm333 = vcmp.eq.s32.totalorder %v332, 1
        %v334 = vsel %vm333, %v324, 0.0
        %v335 = vlaneseq
        %v336 = vshrl.u32 %v335, 7
        %v337 = vadd.s32 %v336, 8
        %v338 = vlaneseq
        %v339 = vand.u32 %v338, 127
        %vm340 = vcmp.eq.s32.totalorder %v336, 0
        %vm341 = vcmp.eq.s32.totalorder %v337, 0
        %v342 = vrot.slane %v290, 7
        %v343 = vrot.slane %v291, 7
        %vm344 = vcmp.lt.s32.totalorder %v336, 1
        %v345 = vsel %vm344, %v342, %v343
        %v346 = vsel %vm344, %v343, %v342
        %v347 = vsel %vm340, 1, 0
        %v348 = vsel %vm341, 1, 0
        %vm349 = vcmp.eq.s32.totalorder %v347, 1
        %vm350 = vcmp.eq.s32.totalorder %v348, 1
        %v351 = vlaneseq
        %v352 = vshrl.u32 %v351, 7
        %v353 = vsub.s32 0, %v352
        %v354 = vrot.slane %v329, %v353
        %v355 = vsel %vm349, %v354, %v346
        %v356 = vsel %vm350, %v354, %v345
        %vm357 = vcmp.eq.s32.totalorder %v336, 15
        %vm358 = vcmp.eq.s32.totalorder %v337, 15
        %v359 = vrot.slane %v290, 1
        %v360 = vrot.slane %v291, 1
        %vm361 = vcmp.lt.s32.totalorder %v336, 7
        %v362 = vsel %vm361, %v359, %v360
        %v363 = vsel %vm361, %v360, %v359
        %v364 = vsel %vm357, 1, 0
        %v365 = vsel %vm358, 1, 0
        %vm366 = vcmp.eq.s32.totalorder %v364, 1
        %vm367 = vcmp.eq.s32.totalorder %v365, 1
        %v368 = vlaneseq
        %v369 = vshrl.u32 %v368, 7
        %v370 = vsub.s32 0, %v369
        %v371 = vrot.slane %v334, %v370
        %v372 = vsel %vm366, %v371, %v362
        %v373 = vsel %vm367, %v371, %v363
        %s374 = sld [smem:[#allocation2]]
        %s375 = sld [smem:[#allocation2 + $0x1]]
        %s376 = sld [smem:[#allocation2 + $0x2]]
        %s377 = sld [smem:[#allocation2 + $0x3]]
        %s378 = sld [smem:[#allocation2 + $0x4]]
        %s379 = sld [smem:[#allocation2 + $0x5]]
        %s380 = sld [smem:[#allocation2 + $0x6]]
        %s381 = sld [smem:[#allocation2 + $0x7]]
        %s382 = sld [smem:[#allocation2 + $0x8]]
        %v383 = vstv %s374
        %v384 = vmul.f32 %v383, %v355
        %v385 = vmul.f32 %v383, %v356
        %v386 = vstv %s377
        %v387 = vmul.f32 %v386, %v290
        %v388 = vmul.f32 %v386, %v291
        %v389 = vadd.f32 %v384, %v387
        %v390 = vadd.f32 %v385, %v388
        %v391 = vstv %s380
        %v392 = vmul.f32 %v391, %v372
        %v393 = vmul.f32 %v391, %v373
        %v394 = vadd.f32 %v389, %v392
        %v395 = vadd.f32 %v390, %v393
        %v396 = vstv %s375
        %v397 = vmul.f32 %v396, %v355
        %v398 = vmul.f32 %v396, %v356
        %v399 = vstv %s378
        %v400 = vmul.f32 %v399, %v290
        %v401 = vmul.f32 %v399, %v291
        %v402 = vadd.f32 %v397, %v400
        %v403 = vadd.f32 %v398, %v401
        %v404 = vstv %s381
        %v405 = vmul.f32 %v404, %v372
        %v406 = vmul.f32 %v404, %v373
        %v407 = vadd.f32 %v402, %v405
        %v408 = vadd.f32 %v403, %v406
        %v409 = vstv %s376
        %v410 = vmul.f32 %v409, %v355
        %v411 = vmul.f32 %v409, %v356
        %v412 = vstv %s379
        %v413 = vmul.f32 %v412, %v290
        %v414 = vmul.f32 %v412, %v291
        %v415 = vadd.f32 %v410, %v413
        %v416 = vadd.f32 %v411, %v414
        %v417 = vstv %s382
        %v418 = vmul.f32 %v417, %v372
        %v419 = vmul.f32 %v417, %v373
        %v420 = vadd.f32 %v415, %v418
        %v421 = vadd.f32 %v416, %v419
        %vm422 = vcmp.eq.s32.totalorder %v339, 0
        %vm423 = vcmask 1047680
        %424 = vrot.lane.b32.xlu0 %v394, 16
        %v425 = vpop.permute.xlu0 %424
        %v426 = vsel %vm423, %v425, %v394
        %427 = vrot.lane.b32.xlu0 %v395, 16
        %v428 = vpop.permute.xlu0 %427
        %v429 = vsel %vm423, %v428, %v395
        %430 = vrot.lane.b32.xlu0 %v426, 16
        %v431 = vpop.permute.xlu0 %430
        %432 = vrot.lane.b32.xlu0 %v429, 16
        %v433 = vpop.permute.xlu0 %432
        %v434 = vsel %vm423, %v431, %v394
        %v435 = vsel %vm423, %v433, %v395
        %v436 = vsel %vm422, 1, 0
        %vm437 = vcmp.eq.s32.totalorder %v436, 1
        %440 = vrot.lane.b32.xlu0 %v434, 113
        %v441 = vpop.permute.xlu0 %440
        %442 = vrot.lane.b32.xlu0 %v435, 113
        %v443 = vpop.permute.xlu0 %442
        %v446 = vsel %vm437, 0.0, %v441
        %v447 = vsel %vm437, 0.0, %v443
        %vm448 = vcmp.eq.s32.totalorder %v339, 15
        %449 = vrot.lane.b32.xlu0 %v420, 16
        %v450 = vpop.permute.xlu0 %449
        %v451 = vsel %vm423, %v450, %v420
        %452 = vrot.lane.b32.xlu0 %v421, 16
        %v453 = vpop.permute.xlu0 %452
        %v454 = vsel %vm423, %v453, %v421
        %455 = vrot.lane.b32.xlu0 %v451, 16
        %v456 = vpop.permute.xlu0 %455
        %457 = vrot.lane.b32.xlu0 %v454, 16
        %v458 = vpop.permute.xlu0 %457
        %v459 = vsel %vm423, %v456, %v420
        %v460 = vsel %vm423, %v458, %v421
        %v461 = vsel %vm448, 1, 0
        %vm462 = vcmp.eq.s32.totalorder %v461, 1
        %465 = vrot.lane.b32.xlu0 %v459, 127
        %v466 = vpop.permute.xlu0 %465
        %467 = vrot.lane.b32.xlu0 %v460, 127
        %v468 = vpop.permute.xlu0 %467
        %v471 = vsel %vm462, 0.0, %v466
        %v472 = vsel %vm462, 0.0, %v468
        %v473 = vadd.f32 %v407, %v446
        %v474 = vadd.f32 %v408, %v447
        %v475 = vadd.f32 %v473, %v471
        %v476 = vadd.f32 %v474, %v472
        %s477 = sld [smem:[#allocation6]]
        %v478 = vstv %s477
        %v479 = vmul.f32 %v478, %v475
        %v480 = vmul.f32 %v478, %v476
        %s481 = sld [smem:[#allocation8]]
        %v482 = vstv %s481
        %v483 = vadd.f32 %v479, %v482
        %v484 = vadd.f32 %v480, %v482
        %v485 = vadd.f32 %v483, 3.0
        %v486 = vadd.f32 %v484, 3.0
        %v487 = vmax.f32 %v485, 0.0
        %v488 = vmax.f32 %v486, 0.0
        %v489 = vmin.f32 %v487, 6.0
        %v490 = vmin.f32 %v488, 6.0
        %v491 = vmul.f32 %v483, %v489
        %v492 = vmul.f32 %v484, %v490
        %v493 = vmul.f32 %v491, 0.16666667
        %v494 = vmul.f32 %v492, 0.16666667
        %vm495 = vcmask 130048
        %496 = vst.msk [vmem:[%s268] sm:$0xff] %vm495, %v493
        %497 = vst.msk [vmem:[%s268 + $0x8] sm:$0xff] %vm495, %v494
        %s498 = sld [smem:[#allocation6 + $0x1]]
        %v499 = vstv %s498
        %v500 = vmul.f32 %v499, %v475
        %v501 = vmul.f32 %v499, %v476
        %s502 = sld [smem:[#allocation8 + $0x1]]
        %v503 = vstv %s502
        %v504 = vadd.f32 %v500, %v503
        %v505 = vadd.f32 %v501, %v503
        %v506 = vadd.f32 %v504, 3.0
        %v507 = vadd.f32 %v505, 3.0
        %v508 = vmax.f32 %v506, 0.0
        %v509 = vmax.f32 %v507, 0.0
        %v510 = vmin.f32 %v508, 6.0
        %v511 = vmin.f32 %v509, 6.0
        %v512 = vmul.f32 %v504, %v510
        %v513 = vmul.f32 %v505, %v511
        %v514 = vmul.f32 %v512, 0.16666667
        %v515 = vmul.f32 %v513, 0.16666667
        %s516 = scalar_lea.vmem %s268, 16 [#allocation10]
        %517 = vst.msk [vmem:[%s516] sm:$0xff] %vm495, %v514
        %518 = vst.msk [vmem:[%s516 + $0x8] sm:$0xff] %vm495, %v515
        %s519 = sld [smem:[#allocation6 + $0x2]]
        %v520 = vstv %s519
        %v521 = vmul.f32 %v520, %v475
        %v522 = vmul.f32 %v520, %v476
        %s523 = sld [smem:[#allocation8 + $0x2]]
        %v524 = vstv %s523
        %v525 = vadd.f32 %v521, %v524
        %v526 = vadd.f32 %v522, %v524
        %v527 = vadd.f32 %v525, 3.0
        %v528 = vadd.f32 %v526, 3.0
        %v529 = vmax.f32 %v527, 0.0
        %v530 = vmax.f32 %v528, 0.0
        %v531 = vmin.f32 %v529, 6.0
        %v532 = vmin.f32 %v530, 6.0
        %v533 = vmul.f32 %v525, %v531
        %v534 = vmul.f32 %v526, %v532
        %v535 = vmul.f32 %v533, 0.16666667
        %v536 = vmul.f32 %v534, 0.16666667
        %s537 = scalar_lea.vmem %s268, 32 [#allocation10]
        %538 = vst.msk [vmem:[%s537] sm:$0xff] %vm495, %v535
        %539 = vst.msk [vmem:[%s537 + $0x8] sm:$0xff] %vm495, %v536
        %s540 = sld [smem:[#allocation6 + $0x3]]
        %v541 = vstv %s540
        %v542 = vmul.f32 %v541, %v475
        %v543 = vmul.f32 %v541, %v476
        %s544 = sld [smem:[#allocation8 + $0x3]]
        %v545 = vstv %s544
        %v546 = vadd.f32 %v542, %v545
        %v547 = vadd.f32 %v543, %v545
        %v548 = vadd.f32 %v546, 3.0
        %v549 = vadd.f32 %v547, 3.0
        %v550 = vmax.f32 %v548, 0.0
        %v551 = vmax.f32 %v549, 0.0
        %v552 = vmin.f32 %v550, 6.0
        %v553 = vmin.f32 %v551, 6.0
        %v554 = vmul.f32 %v546, %v552
        %v555 = vmul.f32 %v547, %v553
        %v556 = vmul.f32 %v554, 0.16666667
        %v557 = vmul.f32 %v555, 0.16666667
        %s558 = scalar_lea.vmem %s268, 48 [#allocation10]
        %559 = vst.msk [vmem:[%s558] sm:$0xff] %vm495, %v556
        %560 = vst.msk [vmem:[%s558 + $0x8] sm:$0xff] %vm495, %v557
        %s561 = sld [smem:[#allocation6 + $0x4]]
        %v562 = vstv %s561
        %v563 = vmul.f32 %v562, %v475
        %v564 = vmul.f32 %v562, %v476
        %s565 = sld [smem:[#allocation8 + $0x4]]
        %v566 = vstv %s565
        %v567 = vadd.f32 %v563, %v566
        %v568 = vadd.f32 %v564, %v566
        %v569 = vadd.f32 %v567, 3.0
        %v570 = vadd.f32 %v568, 3.0
        %v571 = vmax.f32 %v569, 0.0
        %v572 = vmax.f32 %v570, 0.0
        %v573 = vmin.f32 %v571, 6.0
        %v574 = vmin.f32 %v572, 6.0
        %v575 = vmul.f32 %v567, %v573
        %v576 = vmul.f32 %v568, %v574
        %v577 = vmul.f32 %v575, 0.16666667
        %v578 = vmul.f32 %v576, 0.16666667
        %s579 = scalar_lea.vmem %s268, 64 [#allocation10]
        %580 = vst.msk [vmem:[%s579] sm:$0xff] %vm495, %v577
        %581 = vst.msk [vmem:[%s579 + $0x8] sm:$0xff] %vm495, %v578
        %s582 = sld [smem:[#allocation6 + $0x5]]
        %v583 = vstv %s582
        %v584 = vmul.f32 %v583, %v475
        %v585 = vmul.f32 %v583, %v476
        %s586 = sld [smem:[#allocation8 + $0x5]]
        %v587 = vstv %s586
        %v588 = vadd.f32 %v584, %v587
        %v589 = vadd.f32 %v585, %v587
        %v590 = vadd.f32 %v588, 3.0
        %v591 = vadd.f32 %v589, 3.0
        %v592 = vmax.f32 %v590, 0.0
        %v593 = vmax.f32 %v591, 0.0
        %v594 = vmin.f32 %v592, 6.0
        %v595 = vmin.f32 %v593, 6.0
        %v596 = vmul.f32 %v588, %v594
        %v597 = vmul.f32 %v589, %v595
        %v598 = vmul.f32 %v596, 0.16666667
        %v599 = vmul.f32 %v597, 0.16666667
        %s600 = scalar_lea.vmem %s268, 80 [#allocation10]
        %601 = vst.msk [vmem:[%s600] sm:$0xff] %vm495, %v598
        %602 = vst.msk [vmem:[%s600 + $0x8] sm:$0xff] %vm495, %v599
        %s603 = sld [smem:[#allocation6 + $0x6]]
        %v604 = vstv %s603
        %v605 = vmul.f32 %v604, %v475
        %v606 = vmul.f32 %v604, %v476
        %s607 = sld [smem:[#allocation8 + $0x6]]
        %v608 = vstv %s607
        %v609 = vadd.f32 %v605, %v608
        %v610 = vadd.f32 %v606, %v608
        %v611 = vadd.f32 %v609, 3.0
        %v612 = vadd.f32 %v610, 3.0
        %v613 = vmax.f32 %v611, 0.0
        %v614 = vmax.f32 %v612, 0.0
        %v615 = vmin.f32 %v613, 6.0
        %v616 = vmin.f32 %v614, 6.0
        %v617 = vmul.f32 %v609, %v615
        %v618 = vmul.f32 %v610, %v616
        %v619 = vmul.f32 %v617, 0.16666667
        %v620 = vmul.f32 %v618, 0.16666667
        %s621 = scalar_lea.vmem %s268, 96 [#allocation10]
        %622 = vst.msk [vmem:[%s621] sm:$0xff] %vm495, %v619
        %623 = vst.msk [vmem:[%s621 + $0x8] sm:$0xff] %vm495, %v620
        %s624 = sld [smem:[#allocation6 + $0x7]]
        %v625 = vstv %s624
        %v626 = vmul.f32 %v625, %v475
        %v627 = vmul.f32 %v625, %v476
        %s628 = sld [smem:[#allocation8 + $0x7]]
        %v629 = vstv %s628
        %v630 = vadd.f32 %v626, %v629
        %v631 = vadd.f32 %v627, %v629
        %v632 = vadd.f32 %v630, 3.0
        %v633 = vadd.f32 %v631, 3.0
        %v634 = vmax.f32 %v632, 0.0
        %v635 = vmax.f32 %v633, 0.0
        %v636 = vmin.f32 %v634, 6.0
        %v637 = vmin.f32 %v635, 6.0
        %v638 = vmul.f32 %v630, %v636
        %v639 = vmul.f32 %v631, %v637
        %v640 = vmul.f32 %v638, 0.16666667
        %v641 = vmul.f32 %v639, 0.16666667
        %s642 = scalar_lea.vmem %s268, 112 [#allocation10]
        %643 = vst.msk [vmem:[%s642] sm:$0xff] %vm495, %v640
        %644 = vst.msk [vmem:[%s642 + $0x8] sm:$0xff] %vm495, %v641
        %s645 = sand.u32 %s134, 1
        %s646 = scalar_lea.sflag [#allocation4], %s645
        %s647 = sand.u32 %s134, 1
        %s648 = smul.addr %s647, 128
        %s649 = scalar_lea.vmem [#allocation10], %s648
        // Predicated region
        $region53: #{sharpen_conv_forward.1} parent=35 // pred_check
          %p650 = pneg %p144
        $region54: #{sharpen_conv_forward.1} parent=35 // pred_check_branch
          %652 = sbr.rel (%p650) target = $region56
        $region55: #{sharpen_conv_forward.1} parent=35 // pred_region
          %s653 = smul.u32 2, %s28
          %s655 = ssub.s32 2048, 2048
          %656 = vsyncadd %s646, %s655
          %s657 = smul.addr %s27, 16
          %s658 = sadd.s32 %s653, %s657
          %s659 = smul.addr %s658, 128
          %s660 = scalar_lea.hbm %s4, %s659
          %s661 = sshll.u32 %s649, 4
          %s662 = int_to_ptr.vmem [resolvable:$true] %s661
          %667 = dma.vmem_to_hbm [thread:$0]  %s662, 2048, %s660, %s646, 128, 128, 8
        $region56: #{sharpen_conv_forward.1} parent=35 // pred_fallthru
          _
      $region36: #{sharpen_conv_forward.1} parent=5 // pred_fallthru
        _
      %p668 = scmp.le.s32.totalorder 2, %s18
      // Predicated region
      $region57: #{sharpen_conv_forward.1} parent=5 // pred_check
        %p669 = pneg %p668
      $region58: #{sharpen_conv_forward.1} parent=5 // pred_check_branch
        %671 = sbr.rel (%p669) target = $region60
      $region59: #{sharpen_conv_forward.1} parent=5 // pred_region
        %s672 = ssub.s32 %s18, 2
        // Predicated region
        $region61: #{sharpen_conv_forward.1} parent=59 // pred_check
          %p673 = pneg %p150
        $region62: #{sharpen_conv_forward.1} parent=59 // pred_check_branch
          %675 = sbr.rel (%p673) target = $region64
        $region63: #{sharpen_conv_forward.1} parent=59 // pred_region
          %s676 = sand.u32 %s135, 1
          %s677 = scalar_lea.sflag [#allocation4], %s676
          %s678 = sand.u32 %s135, 1
          %s679 = smul.addr %s678, 128
          %s680 = scalar_lea.vmem [#allocation10], %s679
          %681 = dma.done %s677, 2048
        $region64: #{sharpen_conv_forward.1} parent=59 // pred_fallthru
          _
      $region60: #{sharpen_conv_forward.1} parent=5 // pred_fallthru
        _
    $region6: #{sharpen_conv_forward.1} parent=1 // loop_footer
      %s22 = sadd.s32 1, %s18
    $region7: #{sharpen_conv_forward.1} parent=1 // loop_footer_branch
      %17 = sbr.rel target = $region3
    $region8: #{sharpen_conv_forward.1} parent=1 // loop_exit
      _
    %682 = vsyncpa [#allocation3], 1
    %s683 = scalar_lea.sflag [#allocation3], 1
    %684 = vsyncpa %s683, 1
    %685 = vsyncpa [#allocation4], 1
    %s686 = scalar_lea.sflag [#allocation4], 1
    %687 = vsyncpa %s686, 1
    %688 = vsyncpa [#allocation5], 1
    %s689 = scalar_lea.sflag [#allocation5], 1
    %690 = vsyncpa %s689, 1
    %691 = vsyncpa [#allocation7], 1

</llo_original>
